<compile_context>
chip_gen: v7x
topology: tpu7x:2x2x1
jax: 0.10.0
libtpu: 0.0.40
codegen_flags: <defaults>
</compile_context>

<pallas_src>
import jax
import jax.numpy as jnp
import numpy as np
from jax.experimental import pallas as pl
from jax.experimental.pallas import tpu as pltpu

EPS = 1e-5
MOMENTUM = 0.9


def _vmem_plan():
    """Return (vmem_limit_bytes, stats_block_bytes, apply_block_bytes)."""
    cap = None
    try:
        cap = int(pltpu.get_tpu_info().vmem_capacity_bytes)
    except Exception:
        try:
            kind = jax.devices()[0].device_kind.lower()
            if "v7" in kind or "7x" in kind:
                cap = 64 << 20
            elif any(t in kind for t in ("v4", "v5", "v6")):
                cap = 128 << 20
        except Exception:
            cap = None
    if cap is None:                 # unknown chip: stay conservative
        return 32 << 20, 6 << 20, 3 << 20
    if cap >= 100 << 20:            # v4/v5e/v5p/v6e: 128 MiB VMEM
        return 96 << 20, 12 << 20, 6 << 20
    if cap >= 56 << 20:             # v7x: 64 MiB VMEM per TensorCore
        return 44 << 20, 8 << 20, 4 << 20
    return 32 << 20, 6 << 20, 3 << 20


def _plan_tiles(hw, c_rows, itemsize, stats_block_bytes, apply_block_bytes):
    """Lane-dense (multiple-of-128) HW tiles per phase + the padded HW extent.

    The stats tile is an integer multiple of the apply tile, and the padded HW
    is a multiple of the stats tile, so both grids divide exactly."""
    rows = max(c_rows, 1)
    hw128 = pl.cdiv(hw, 128) * 128
    apply_elems = max(128, (apply_block_bytes // (itemsize * rows)) // 128 * 128)
    tile_apply = min(apply_elems, hw128)
    k = max(1, stats_block_bytes // (tile_apply * itemsize * rows))
    tile_stats = min(tile_apply * k, pl.cdiv(hw, tile_apply) * tile_apply)
    hw_pad = pl.cdiv(hw, tile_stats) * tile_stats
    return tile_apply, tile_stats, hw_pad


def _rcn_stats_kernel(x_ref, m_ref, s_ref, acc_ref):
    """Accumulate per-(n, c) partial sums over the HW (lane) axis.

    x_ref: (1, C, T)     m_ref: (1, Cm, T) with Cm == 1 or C
    acc_ref: (8, C) VMEM scratch, rows 0..4 =
             [sum m, sum x*m, sum x^2*m^4, sum x*m^3, sum m^2]
    s_ref: (1, 1, 5, C) written once on the final reduction step.
    """
    h = pl.program_id(2)

    @pl.when(h == 0)
    def _():
        acc_ref[...] = jnp.zeros_like(acc_ref)

    x = x_ref[...].astype(jnp.float32)            # (1, C, T)
    m = m_ref[...].astype(jnp.float32)            # (1, Cm, T)
    C = x.shape[1]

    xm = x * m                                    # x * m
    xm2 = xm * m                                  # x * m^2

    # Mask-only sums: reduce the small (1, Cm, T) array, then lane-broadcast
    # to (1, C) instead of reducing a C-times-broadcast mask.
    # TODO(synk): on VALU-bound generations (v7x f32 / v6e bf16) offload the
    # three big lane reductions to the MXU via a dot with a ones column.
    s_m = jnp.broadcast_to(jnp.sum(m, axis=2), (1, C))
    s_m2 = jnp.broadcast_to(jnp.sum(m * m, axis=2), (1, C))
    s_xm = jnp.sum(xm, axis=2)                    # (1, C)
    s_xm3 = jnp.sum(xm2 * m, axis=2)              # (1, C)  sum x*m^3
    s_x2m4 = jnp.sum(xm2 * xm2, axis=2)           # (1, C)  sum x^2*m^4

    acc_ref[0:1, :] += s_m
    acc_ref[1:2, :] += s_xm
    acc_ref[2:3, :] += s_x2m4
    acc_ref[3:4, :] += s_xm3
    acc_ref[4:5, :] += s_m2

    @pl.when(h == pl.num_programs(2) - 1)
    def _():
        s_ref[...] = acc_ref[0:5, :][None, None]


def _rcn_apply_kernel(x_ref, m_ref, scale_ref, shift_ref, o_ref):
    """out = x + m * ((x*m)*scale + shift - x)   with per-(n, c) scale/shift.

    scale/shift blocks are constant across the HW grid axis, so Pallas keeps
    them resident (no re-fetch per HW tile).
    """
    # TODO(synk): when x is bf16 on v6e/v7x, compute in bf16 to halve vreg
    # pressure; f32 compute kept here for exactness on every generation.
    x = x_ref[...].astype(jnp.float32)            # (1, C, T)
    m = m_ref[...].astype(jnp.float32)            # (1, Cm, T)
    scale = scale_ref[...]                        # (1, C, 1)
    shift = shift_ref[...]                        # (1, C, 1)
    y = (x * m) * scale + shift                   # normalized + affine (region)
    o_ref[...] = (x + m * (y - x)).astype(o_ref.dtype)


def rcn_forward(x, mask_t, weight, bias, mean_weight, var_weight,
                running_mean, running_var, momentum=MOMENTUM, eps=EPS):
    """Training-mode forward of RCNModule. x: (N, C, H, W); mask_t broadcastable
    to x. Returns (output, new_running_mean, new_running_var)."""
    N, C, H, W = x.shape
    HW = H * W

    # Keep the mask at its natural channel count Cm (usually 1): ~1/C of the
    # mask HBM traffic / VMEM; the broadcast across C is free on the VPU.
    m = jnp.asarray(mask_t)
    if m.ndim == 2:
        m = m[None, None]
    elif m.ndim == 3:
        m = m[None]
    elif m.ndim != 4:
        m = jnp.broadcast_to(m, (N, 1, H, W))
    Cm = m.shape[1]
    m = jnp.broadcast_to(m, (N, Cm, H, W)).astype(x.dtype)

    x3 = x.reshape(N, C, HW)
    m3 = m.reshape(N, Cm, HW)

    vmem_limit, stats_bb, apply_bb = _vmem_plan()
    itemsize = jnp.dtype(x.dtype).itemsize
    tile_apply, tile_stats, hw_pad = _plan_tiles(
        HW, max(C, Cm), itemsize, stats_bb, apply_bb)

    if hw_pad != HW:
        # Zero-padding the mask keeps every accumulated sum exact (all five
        # statistics carry at least one factor of m); padded apply outputs are
        # sliced away below.
        pad = ((0, 0), (0, 0), (0, hw_pad - HW))
        x3 = jnp.pad(x3, pad)
        m3 = jnp.pad(m3, pad)

    n_stats = hw_pad // tile_stats
    split = 2 if (n_stats % 2 == 0 and n_stats >= 2) else 1
    hk = n_stats // split
    n_apply = hw_pad // tile_apply

    # ---------------- Phase 1: per-(n, c) partial sums over HW -------------
    stats4 = pl.pallas_call(
        _rcn_stats_kernel,
        out_shape=jax.ShapeDtypeStruct((N, split, 5, C), jnp.float32),
        grid=(N, split, hk),
        in_specs=[
            pl.BlockSpec((1, C, tile_stats), lambda n, s, h: (n, 0, s * hk + h)),
            pl.BlockSpec((1, Cm, tile_stats), lambda n, s, h: (n, 0, s * hk + h)),
        ],
        out_specs=pl.BlockSpec((1, 1, 5, C), lambda n, s, h: (n, s, 0, 0)),
        scratch_shapes=[pltpu.VMEM((8, C), jnp.float32)],
        compiler_params=pltpu.CompilerParams(
            dimension_semantics=("parallel", "parallel", "arbitrary"),
            vmem_limit_bytes=vmem_limit),
    )(x3, m3)

    # ---------------- tiny O(N*C) combine (plain JAX glue) -----------------
    stats = jnp.sum(stats4, axis=1)                                      # (N, 5, C)
    s_m, s_xm, s_x2m4, s_xm3, s_m2 = [stats[:, i, :] for i in range(5)]  # (N, C)

    def masked_stats(sm, sxm, sx2m4, sxm3, sm2):
        # mean = E[x*m]/E[m];  var = E[((x*m - mean)*m)^2]/E[m], expanded so it
        # only needs the accumulated sums (exact for any mask; f32 accumulate).
        mean = sxm / sm
        # TODO(synk): expanded form can cancel when |mean| >> spread; a cheap
        # per-(n,c) pre-shift or Kahan accumulation in Phase 1 would harden it.
        var = (sx2m4 - 2.0 * mean * sxm3 + mean * mean * sm2) / sm
        return mean, var

    mean_in, var_in = masked_stats(s_m, s_xm, s_x2m4, s_xm3, s_m2)       # (N, C)
    b = jnp.sum(stats, axis=0)                                           # (5, C)
    mean_bn, var_bn = masked_stats(b[0], b[1], b[2], b[3], b[4])         # (C,)
    l = jnp.sum(stats, axis=2)                                           # (N, 5)
    mean_ln, var_ln = masked_stats(l[:, 0], l[:, 1], l[:, 2], l[:, 3], l[:, 4])

    mw = jax.nn.softmax(mean_weight.astype(jnp.float32))
    vw = jax.nn.softmax(var_weight.astype(jnp.float32))

    x_mean = mw[0] * mean_in + mw[1] * mean_ln[:, None] + mw[2] * mean_bn[None, :]
    x_var = vw[0] * var_in + vw[1] * var_ln[:, None] + vw[2] * var_bn[None, :]

    gamma = weight.reshape(C).astype(jnp.float32)
    beta = bias.reshape(C).astype(jnp.float32)
    inv_std = jax.lax.rsqrt(x_var + eps)                                 # (N, C)
    scale = gamma[None, :] * inv_std
    shift = beta[None, :] - scale * x_mean

    # ---------------- Phase 2: apply (fully parallel, lane-dense) ----------
    out3 = pl.pallas_call(
        _rcn_apply_kernel,
        out_shape=jax.ShapeDtypeStruct((N, C, hw_pad), x.dtype),
        grid=(N, n_apply),
        in_specs=[
            pl.BlockSpec((1, C, tile_apply), lambda n, h: (n, 0, h)),
            pl.BlockSpec((1, Cm, tile_apply), lambda n, h: (n, 0, h)),
            pl.BlockSpec((1, C, 1), lambda n, h: (n, 0, 0)),
            pl.BlockSpec((1, C, 1), lambda n, h: (n, 0, 0)),
        ],
        out_specs=pl.BlockSpec((1, C, tile_apply), lambda n, h: (n, 0, h)),
        compiler_params=pltpu.CompilerParams(
            dimension_semantics=("parallel", "parallel"),
            vmem_limit_bytes=vmem_limit),
    )(x3, m3, scale.reshape(N, C, 1), shift.reshape(N, C, 1))

    out = out3[:, :, :HW].reshape(N, C, H, W)

    # Running-stat momentum update (PyTorch mutates buffers in place; here the
    # new buffers are returned instead).
    mean_bn4 = mean_bn.reshape(1, C, 1, 1)
    var_bn4 = var_bn.reshape(1, C, 1, 1)
    new_running_mean = momentum * running_mean + (1.0 - momentum) * mean_bn4
    new_running_var = momentum * running_var + (1.0 - momentum) * var_bn4
    return out, new_running_mean, new_running_var


# TODO(synk): small-C fold ((N,C,HW)->(N*C,HW) with 8-row tiles) and a fused
# single-pass variant for activations that fit in VMEM are further perf levers
# not implemented here.


def rcn_reference(x, mask_t, weight, bias, mean_weight, var_weight):
    """Plain-JAX mirror of the PyTorch training-mode forward, for checking."""
    m = jnp.broadcast_to(mask_t, x.shape).astype(jnp.float32)
    xm = x * m
    mask_mean_bn = jnp.mean(m, (0, 2, 3), keepdims=True)
    mean_bn = jnp.mean(xm, (0, 2, 3), keepdims=True) / mask_mean_bn
    var_bn = jnp.mean(((xm - mean_bn) * m) ** 2, (0, 2, 3), keepdims=True) / mask_mean_bn
    mask_mean_in = jnp.mean(m, (2, 3), keepdims=True)
    mean_in = jnp.mean(xm, (2, 3), keepdims=True) / mask_mean_in
    var_in = jnp.mean(((xm - mean_in) * m) ** 2, (2, 3), keepdims=True) / mask_mean_in
    mask_mean_ln = jnp.mean(m, (1, 2, 3), keepdims=True)
    mean_ln = jnp.mean(xm, (1, 2, 3), keepdims=True) / mask_mean_ln
    var_ln = jnp.mean(((xm - mean_ln) * m) ** 2, (1, 2, 3), keepdims=True) / mask_mean_ln
    mw = jax.nn.softmax(mean_weight)
    vw = jax.nn.softmax(var_weight)
    x_mean = mw[0] * mean_in + mw[1] * mean_ln + mw[2] * mean_bn
    x_var = vw[0] * var_in + vw[1] * var_ln + vw[2] * var_bn
    x_out = weight * (xm - x_mean) / jnp.sqrt(x_var + EPS) + bias
    out = x_out * m + x * (1.0 - m)
    return out, mean_bn, var_bn


if __name__ == "__main__":
    key = jax.random.PRNGKey(0)
    k_x, k_m, k_w = jax.random.split(key, 3)

    N, C, H, W = 2, 4, 16, 16
    x = jax.random.normal(k_x, (N, C, H, W), dtype=jnp.float32)
    # binary region mask, shared across channels (broadcastable to x)
    mask_t = (jax.random.uniform(k_m, (N, 1, H, W)) > 0.3).astype(jnp.float32)

    # Deterministic parameter init mirroring reset_parameters():
    mean_weight = jnp.ones((3,), jnp.float32)                      # torch.ones(3)
    var_weight = jnp.ones((3,), jnp.float32)                       # torch.ones(3)
    weight = jax.random.uniform(k_w, (1, C, 1, 1), jnp.float32)    # nn.init.uniform_
    bias = jnp.zeros((1, C, 1, 1), jnp.float32)                    # nn.init.zeros_
    running_mean = jnp.zeros((1, C, 1, 1), jnp.float32)
    running_var = jnp.ones((1, C, 1, 1), jnp.float32)

    out, new_rm, new_rv = rcn_forward(x, mask_t, weight, bias,
                                      mean_weight, var_weight,
                                      running_mean, running_var)
    jax.block_until_ready(out)
    jax.block_until_ready(new_rm)
    jax.block_until_ready(new_rv)

    ref_out, ref_mean_bn, ref_var_bn = rcn_reference(
        x, mask_t, weight, bias, mean_weight, var_weight)
    ref_rm = MOMENTUM * running_mean + (1.0 - MOMENTUM) * ref_mean_bn
    ref_rv = MOMENTUM * running_var + (1.0 - MOMENTUM) * ref_var_bn

    np.testing.assert_allclose(np.asarray(out), np.asarray(ref_out),
                               rtol=1e-4, atol=1e-4)
    np.testing.assert_allclose(np.asarray(new_rm), np.asarray(ref_rm),
                               rtol=1e-4, atol=1e-4)
    np.testing.assert_allclose(np.asarray(new_rv), np.asarray(ref_rv),
                               rtol=1e-4, atol=1e-4)
    print("KERNEL_OK")
</pallas_src>

<mosaic_0001>
module attributes {stable_mosaic.version = 11 : i64} {
  func.func @_rcn_stats_kernel(%arg0: i32, %arg1: i32, %arg2: i32, %arg3: memref<1x4x256xf32, #tpu.memory_space<vmem>>, %arg4: memref<1x1x256xf32, #tpu.memory_space<vmem>>, %arg5: memref<1x1x5x4xf32, #tpu.memory_space<vmem>>, %arg6: memref<8x4xf32, #tpu.memory_space<vmem>>) attributes {dimension_semantics = [#tpu.dimension_semantics<parallel>, #tpu.dimension_semantics<parallel>, #tpu.dimension_semantics<arbitrary>], iteration_bounds = array<i64: 2, 1, 1>, scalar_prefetch = 0 : i64, scratch_operands = 1 : i64, tpu.core_type = #tpu.core_type<tc>, window_params = [{transform_indices = @transform_0, window_bounds = array<i64: 1, 4, 256>}, {transform_indices = @transform_1, window_bounds = array<i64: 1, 1, 256>}, {transform_indices = @transform_2, window_bounds = array<i64: 1, 1, 5, 4>}]} {
    %c0_i32 = arith.constant 0 : i32
    %0 = arith.cmpi eq, %arg2, %c0_i32 : i32
    %1 = arith.extui %0 : i1 to i32
    %c0_i32_0 = arith.constant 0 : i32
    %2 = arith.cmpi ne, %1, %c0_i32_0 : i32
    scf.if %2 {
      %cst_28 = arith.constant 0.000000e+00 : f32
      %40 = vector.broadcast %cst_28 : f32 to vector<8x4xf32>
      %c0_29 = arith.constant 0 : index
      %c0_30 = arith.constant 0 : index
      %41 = vector.load %arg6[%c0_29, %c0_30] : memref<8x4xf32, #tpu.memory_space<vmem>>, vector<8x4xf32>
      tpu.vector_store %arg6[%c0_29, %c0_30], %40 {strides = array<i32>} : memref<8x4xf32, #tpu.memory_space<vmem>>, vector<8x4xf32>,
    } else {
    }
    %c0 = arith.constant 0 : index
    %c0_1 = arith.constant 0 : index
    %c0_2 = arith.constant 0 : index
    %3 = vector.load %arg3[%c0, %c0_1, %c0_2] : memref<1x4x256xf32, #tpu.memory_space<vmem>>, vector<1x4x256xf32>
    %c0_3 = arith.constant 0 : index
    %c0_4 = arith.constant 0 : index
    %c0_5 = arith.constant 0 : index
    %4 = vector.load %arg4[%c0_3, %c0_4, %c0_5] : memref<1x1x256xf32, #tpu.memory_space<vmem>>, vector<1x1x256xf32>
    %5 = vector.broadcast %4 : vector<1x1x256xf32> to vector<1x4x256xf32>
    %6 = arith.mulf %3, %5 : vector<1x4x256xf32>
    %7 = vector.broadcast %4 : vector<1x1x256xf32> to vector<1x4x256xf32>
    %8 = arith.mulf %6, %7 : vector<1x4x256xf32>
    %cst = arith.constant dense<0.000000e+00> : vector<1x1xf32>
    %9 = vector.multi_reduction <add>, %4, %cst [2] : vector<1x1x256xf32> to vector<1x1xf32>
    %10 = vector.shape_cast %9 : vector<1x1xf32> to vector<1x1xf32>
    %11 = vector.broadcast %10 : vector<1x1xf32> to vector<1x4xf32>
    %12 = arith.mulf %4, %4 : vector<1x1x256xf32>
    %cst_6 = arith.constant dense<0.000000e+00> : vector<1x1xf32>
    %13 = vector.multi_reduction <add>, %12, %cst_6 [2] : vector<1x1x256xf32> to vector<1x1xf32>
    %14 = vector.shape_cast %13 : vector<1x1xf32> to vector<1x1xf32>
    %15 = vector.broadcast %14 : vector<1x1xf32> to vector<1x4xf32>
    %cst_7 = arith.constant dense<0.000000e+00> : vector<1x4xf32>
    %16 = vector.multi_reduction <add>, %6, %cst_7 [2] : vector<1x4x256xf32> to vector<1x4xf32>
    %17 = vector.broadcast %4 : vector<1x1x256xf32> to vector<1x4x256xf32>
    %18 = arith.mulf %8, %17 : vector<1x4x256xf32>
    %cst_8 = arith.constant dense<0.000000e+00> : vector<1x4xf32>
    %19 = vector.multi_reduction <add>, %18, %cst_8 [2] : vector<1x4x256xf32> to vector<1x4xf32>
    %20 = arith.mulf %8, %8 : vector<1x4x256xf32>
    %cst_9 = arith.constant dense<0.000000e+00> : vector<1x4xf32>
    %21 = vector.multi_reduction <add>, %20, %cst_9 [2] : vector<1x4x256xf32> to vector<1x4xf32>
    %c0_10 = arith.constant 0 : index
    %c0_11 = arith.constant 0 : index
    %22 = vector.load %arg6[%c0_10, %c0_11] : memref<8x4xf32, #tpu.memory_space<vmem>>, vector<1x4xf32>
    %23 = arith.addf %22, %11 : vector<1x4xf32>
    %c0_12 = arith.constant 0 : index
    %c0_13 = arith.constant 0 : index
    %24 = vector.load %arg6[%c0_12, %c0_13] : memref<8x4xf32, #tpu.memory_space<vmem>>, vector<1x4xf32>
    tpu.vector_store %arg6[%c0_12, %c0_13], %23 {strides = array<i32>} : memref<8x4xf32, #tpu.memory_space<vmem>>, vector<1x4xf32>,
    %c1 = arith.constant 1 : index
    %c0_14 = arith.constant 0 : index
    %25 = vector.load %arg6[%c1, %c0_14] : memref<8x4xf32, #tpu.memory_space<vmem>>, vector<1x4xf32>
    %26 = arith.addf %25, %16 : vector<1x4xf32>
    %c1_15 = arith.constant 1 : index
    %c0_16 = arith.constant 0 : index
    %27 = vector.load %arg6[%c1_15, %c0_16] : memref<8x4xf32, #tpu.memory_space<vmem>>, vector<1x4xf32>
    tpu.vector_store %arg6[%c1_15, %c0_16], %26 {strides = array<i32>} : memref<8x4xf32, #tpu.memory_space<vmem>>, vector<1x4xf32>,
    %c2 = arith.constant 2 : index
    %c0_17 = arith.constant 0 : index
    %28 = vector.load %arg6[%c2, %c0_17] : memref<8x4xf32, #tpu.memory_space<vmem>>, vector<1x4xf32>
    %29 = arith.addf %28, %21 : vector<1x4xf32>
    %c2_18 = arith.constant 2 : index
    %c0_19 = arith.constant 0 : index
    %30 = vector.load %arg6[%c2_18, %c0_19] : memref<8x4xf32, #tpu.memory_space<vmem>>, vector<1x4xf32>
    tpu.vector_store %arg6[%c2_18, %c0_19], %29 {strides = array<i32>} : memref<8x4xf32, #tpu.memory_space<vmem>>, vector<1x4xf32>,
    %c3 = arith.constant 3 : index
    %c0_20 = arith.constant 0 : index
    %31 = vector.load %arg6[%c3, %c0_20] : memref<8x4xf32, #tpu.memory_space<vmem>>, vector<1x4xf32>
    %32 = arith.addf %31, %19 : vector<1x4xf32>
    %c3_21 = arith.constant 3 : index
    %c0_22 = arith.constant 0 : index
    %33 = vector.load %arg6[%c3_21, %c0_22] : memref<8x4xf32, #tpu.memory_space<vmem>>, vector<1x4xf32>
    tpu.vector_store %arg6[%c3_21, %c0_22], %32 {strides = array<i32>} : memref<8x4xf32, #tpu.memory_space<vmem>>, vector<1x4xf32>,
    %c4 = arith.constant 4 : index
    %c0_23 = arith.constant 0 : index
    %34 = vector.load %arg6[%c4, %c0_23] : memref<8x4xf32, #tpu.memory_space<vmem>>, vector<1x4xf32>
    %35 = arith.addf %34, %15 : vector<1x4xf32>
    %c4_24 = arith.constant 4 : index
    %c0_25 = arith.constant 0 : index
    %36 = vector.load %arg6[%c4_24, %c0_25] : memref<8x4xf32, #tpu.memory_space<vmem>>, vector<1x4xf32>
    tpu.vector_store %arg6[%c4_24, %c0_25], %35 {strides = array<i32>} : memref<8x4xf32, #tpu.memory_space<vmem>>, vector<1x4xf32>,
    %c0_i32_26 = arith.constant 0 : i32
    %37 = arith.cmpi eq, %arg2, %c0_i32_26 : i32
    %38 = arith.extui %37 : i1 to i32
    %c0_i32_27 = arith.constant 0 : i32
    %39 = arith.cmpi ne, %38, %c0_i32_27 : i32
    scf.if %39 {
      %c0_28 = arith.constant 0 : index
      %c0_29 = arith.constant 0 : index
      %40 = vector.load %arg6[%c0_28, %c0_29] : memref<8x4xf32, #tpu.memory_space<vmem>>, vector<5x4xf32>
      %41 = vector.shape_cast %40 : vector<5x4xf32> to vector<1x1x5x4xf32>
      %c0_30 = arith.constant 0 : index
      %c0_31 = arith.constant 0 : index
      %c0_32 = arith.constant 0 : index
      %c0_33 = arith.constant 0 : index
      %42 = vector.load %arg5[%c0_30, %c0_31, %c0_32, %c0_33] : memref<1x1x5x4xf32, #tpu.memory_space<vmem>>, vector<1x1x5x4xf32>
      tpu.vector_store %arg5[%c0_30, %c0_31, %c0_32, %c0_33], %41 {strides = array<i32>} : memref<1x1x5x4xf32, #tpu.memory_space<vmem>>, vector<1x1x5x4xf32>,
    } else {
    }
    return
  }
  func.func @transform_0(%arg0: i32, %arg1: i32, %arg2: i32) -> (i32, i32, i32) {
    %c1_i32 = arith.constant 1 : i32
    %0 = arith.muli %arg1, %c1_i32 : i32
    %1 = arith.addi %0, %arg2 : i32
    %c0_i32 = arith.constant 0 : i32
    %c0_i32_0 = arith.constant 0 : i32
    return %arg0, %c0_i32, %1 : i32, i32, i32
  }
  func.func @transform_1(%arg0: i32, %arg1: i32, %arg2: i32) -> (i32, i32, i32) {
    %c1_i32 = arith.constant 1 : i32
    %0 = arith.muli %arg1, %c1_i32 : i32
    %1 = arith.addi %0, %arg2 : i32
    %c0_i32 = arith.constant 0 : i32
    %c0_i32_0 = arith.constant 0 : i32
    return %arg0, %c0_i32, %1 : i32, i32, i32
  }
  func.func @transform_2(%arg0: i32, %arg1: i32, %arg2: i32) -> (i32, i32, i32, i32) {
    %c0_i32 = arith.constant 0 : i32
    %c0_i32_0 = arith.constant 0 : i32
    %c0_i32_1 = arith.constant 0 : i32
    return %arg0, %arg1, %c0_i32, %c0_i32_0 : i32, i32, i32, i32
  }
}

</mosaic_0001>

<llo_original>
// kernel: tpu_custom_call.1
$region0: #{tpu_custom_call.1}
  #allocation0 [shape = 'u32[]', space=smem, size = 0x4, offset = 0x4, fixed_abs, tag = 'smem constant byte address 0x4 - core index']
  #allocation1 [shape = 'u32[144,128]{1,0:T(1,128)}', space=vmem, size = 0x12000, scoped, tag = 'internal scratch']
  #allocation2 [shape = 'f32[8,4]{1,0:T(8,128)}', space=vmem, size = 0x1000, scoped, tag = 'scratch operand']
  %s0 = inlined_call_operand.hbm [shape: f32[2,4,256], index: 0, kind: input, shape index: {}]
  %s1 = inlined_call_operand.hbm [shape: f32[2,1,256], index: 1, kind: input, shape index: {}]
  %s2 = inlined_call_operand.vmem [shape: f32[2,1,5,4], index: 2, kind: output, shape index: {}]
  %s3 = sld [smem:[#allocation0]]
  $region57: #{tpu_custom_call.1} parent=0
    _
  %s5 = ssub.s32 1, %s3
  %s6 = scalar_select 0, %s5, %s3
  $region1: #{tpu_custom_call.1} parent=0
    #allocation3 [shape = 'u8[8192]{0}', space=vmem, size = 0x2000, scoped, tag = 'input window, operand 0']
    #allocation4 [shape = 's32[2]{0}', space=sflag, size = 0x8, scoped, tag = 'scoped memory for tpu_custom_call.1']
    #allocation5 [shape = 'u8[2048]{0}', space=vmem, size = 0x800, scoped, tag = 'input window, operand 1']
    #allocation6 [shape = 's32[2]{0}', space=sflag, size = 0x8, scoped, tag = 'scoped memory for tpu_custom_call.1']
    %7 = vsyncpa [#allocation4], 0
    %s8 = scalar_lea.sflag [#allocation4], 1
    %9 = vsyncpa %s8, 0
    %10 = vsyncpa [#allocation6], 0
    %s11 = scalar_lea.sflag [#allocation6], 1
    %12 = vsyncpa %s11, 0
    loop: start=0, step=1, limit=4
    $region2: #{tpu_custom_call.1} parent=1 // loop_pre_header
      _
    $region3: #{tpu_custom_call.1} parent=1 // loop_header
      %s14 = sphi 0, %s18
      %p15 = scmp.ge.s32.totalorder %s14, 4
      %s21 = sphi 0, %s40
      %s22 = sphi 0, %s36
      %s23 = sphi 0, %s32
      %s24 = sphi 0, %s21
      %s25 = sphi 0, %s22
      %s26 = sphi 0, %s23
      %s27 = sphi 0, %s24
      %s28 = sphi 0, %s25
      %s29 = sphi 0, %s26
      %s47 = sphi 0, %s49
      %s50 = sphi 0, %s47
      %s51 = sphi 0, %s50
      %s67 = sphi 0, %s51
      %s77 = sphi 0, %s79
      %s80 = sphi 0, %s77
      %s81 = sphi 0, %s80
      %s97 = sphi 0, %s81
      %s105 = sphi 0, %s107
      %s108 = sphi 0, %s105
      %s109 = sphi 0, %s108
      %s125 = sphi 0, %s109
    $region4: #{tpu_custom_call.1} parent=1 // loop_header_branch
      %17 = sbr.rel (%p15) target = $region8
    $region5: #{tpu_custom_call.1} parent=1 // loop_body
      %s19 = ssub.s32 %s14, 1
      %s20 = ssub.s32 %s14, 2
      %s30 = sadd.s32 1, %s23
      %p31 = scmp.ge.s32.totalorder %s30, 1
      %s32 = scalar_select %p31, 0, %s30
      %s33 = sadd.s32 1, %s22
      %s34 = scalar_select %p31, %s33, %s22
      %p35 = scmp.ge.s32.totalorder %s34, 1
      %s36 = scalar_select %p35, 0, %s34
      %s37 = sadd.s32 1, %s21
      %s38 = scalar_select %p35, %s37, %s21
      %p39 = scmp.ge.s32.totalorder %s38, 2
      %s40 = scalar_select %p39, 0, %s38
      %s41 = sadd.s32 %s22, %s23
      %s42 = sadd.s32 %s36, %s32
      %s43 = ssub.s32 %s21, %s40
      %s44 = ssub.s32 %s41, %s42
      %s45 = sor.u32 %s43, %s44
      %p46 = scmp.eq.s32.totalorder %s45, 0
      %s48 = sadd.s32 %s47, 1
      %s49 = scalar_select %p46, %s47, %s48
      %p52 = pneg %p46
      %p53 = scmp.eq.s32.totalorder %s14, 1
      %p54 = por %p52, %p53
      %p55 = scmp.ne.s32.totalorder %s47, %s50
      %p56 = scmp.eq.s32.totalorder %s14, 0
      %p57 = por %p55, %p56
      %p58 = scmp.ne.s32.totalorder %s47, %s50
      %p59 = scmp.eq.s32.totalorder %s19, 1
      %p60 = por %p58, %p59
      %p61 = scmp.ne.s32.totalorder %s50, %s51
      %p62 = scmp.eq.s32.totalorder %s19, 0
      %p63 = por %p61, %p62
      %p64 = scmp.ne.s32.totalorder %s50, %s51
      %p65 = scmp.eq.s32.totalorder %s20, 1
      %p66 = por %p64, %p65
      %p68 = scmp.ne.s32.totalorder %s51, %s67
      %p69 = scmp.eq.s32.totalorder %s20, 0
      %p70 = por %p68, %p69
      %s71 = sadd.s32 %s22, %s23
      %s72 = sadd.s32 %s36, %s32
      %s73 = ssub.s32 %s21, %s40
      %s74 = ssub.s32 %s71, %s72
      %s75 = sor.u32 %s73, %s74
      %p76 = scmp.eq.s32.totalorder %s75, 0
      %s78 = sadd.s32 %s77, 1
      %s79 = scalar_select %p76, %s77, %s78
      %p82 = pneg %p76
      %p83 = scmp.eq.s32.totalorder %s14, 1
      %p84 = por %p82, %p83
      %p85 = scmp.ne.s32.totalorder %s77, %s80
      %p86 = scmp.eq.s32.totalorder %s14, 0
      %p87 = por %p85, %p86
      %p88 = scmp.ne.s32.totalorder %s77, %s80
      %p89 = scmp.eq.s32.totalorder %s19, 1
      %p90 = por %p88, %p89
      %p91 = scmp.ne.s32.totalorder %s80, %s81
      %p92 = scmp.eq.s32.totalorder %s19, 0
      %p93 = por %p91, %p92
      %p94 = scmp.ne.s32.totalorder %s80, %s81
      %p95 = scmp.eq.s32.totalorder %s20, 1
      %p96 = por %p94, %p95
      %p98 = scmp.ne.s32.totalorder %s81, %s97
      %p99 = scmp.eq.s32.totalorder %s20, 0
      %p100 = por %p98, %p99
      %s101 = ssub.s32 %s21, %s40
      %s102 = ssub.s32 %s22, %s36
      %s103 = sor.u32 %s101, %s102
      %p104 = scmp.eq.s32.totalorder %s103, 0
      %s106 = sadd.s32 %s105, 1
      %s107 = scalar_select %p104, %s105, %s106
      %p110 = pneg %p104
      %p111 = scmp.eq.s32.totalorder %s14, 1
      %p112 = por %p110, %p111
      %p113 = scmp.ne.s32.totalorder %s105, %s108
      %p114 = scmp.eq.s32.totalorder %s14, 0
      %p115 = por %p113, %p114
      %p116 = scmp.ne.s32.totalorder %s105, %s108
      %p117 = scmp.eq.s32.totalorder %s19, 1
      %p118 = por %p116, %p117
      %p119 = scmp.ne.s32.totalorder %s108, %s109
      %p120 = scmp.eq.s32.totalorder %s19, 0
      %p121 = por %p119, %p120
      %p122 = scmp.ne.s32.totalorder %s108, %s109
      %p123 = scmp.eq.s32.totalorder %s20, 1
      %p124 = por %p122, %p123
      %p126 = scmp.ne.s32.totalorder %s109, %s125
      %p127 = scmp.eq.s32.totalorder %s20, 0
      %p128 = por %p126, %p127
      %p129 = scmp.le.s32.totalorder 1, %s14
      %p130 = scmp.lt.s32.totalorder %s14, 3
      %p131 = pnand %p129, %p130
      %p132 = pneg %p131
      // Predicated region
      $region9: #{tpu_custom_call.1} parent=5 // pred_check
        _
      $region10: #{tpu_custom_call.1} parent=5 // pred_check_branch
        %134 = sbr.rel (%p131) target = $region12
      $region11: #{tpu_custom_call.1} parent=5 // pred_region
        %s135 = ssub.s32 %s14, 1
      $region12: #{tpu_custom_call.1} parent=5 // pred_fallthru
        _
      %p136 = scmp.lt.s32.totalorder %s14, 2
      // Predicated region
      $region13: #{tpu_custom_call.1} parent=5 // pred_check
        %p137 = pneg %p136
      $region14: #{tpu_custom_call.1} parent=5 // pred_check_branch
        %139 = sbr.rel (%p137) target = $region16
      $region15: #{tpu_custom_call.1} parent=5 // pred_region
        // Predicated region
        $region17: #{tpu_custom_call.1} parent=15 // pred_check
          %p140 = pneg %p57
        $region18: #{tpu_custom_call.1} parent=15 // pred_check_branch
          %142 = sbr.rel (%p140) target = $region20
        $region19: #{tpu_custom_call.1} parent=15 // pred_region
          %s143 = sand.u32 %s47, 1
          %s144 = scalar_lea.sflag [#allocation4], %s143
          %s145 = sand.u32 %s47, 1
          %s146 = smul.addr %s145, 8
          %s147 = scalar_lea.vmem [#allocation3], %s146
          %s148 = sadd.s32 %s22, %s23
          %s149 = smul.u32 2, %s148
          %s151 = ssub.s32 128, 128
          %152 = vsyncadd %s144, %s151
          %s153 = smul.addr %s21, 2
          %s154 = sadd.s32 %s149, %s153
          %s155 = smul.addr %s154, 64
          %s156 = scalar_lea.hbm %s0, %s155
          %s158 = sshll.u32 %s147, 4
          %s159 = int_to_ptr.vmem [resolvable:$true] %s158
          %161 = dma.hbm_to_vmem [thread:$0]  %s156, 128, %s159, %s144
        $region20: #{tpu_custom_call.1} parent=15 // pred_fallthru
          _
        // Predicated region
        $region21: #{tpu_custom_call.1} parent=15 // pred_check
          %p162 = pneg %p87
        $region22: #{tpu_custom_call.1} parent=15 // pred_check_branch
          %164 = sbr.rel (%p162) target = $region24
        $region23: #{tpu_custom_call.1} parent=15 // pred_region
          %s165 = sand.u32 %s77, 1
          %s166 = scalar_lea.sflag [#allocation6], %s165
          %s167 = sand.u32 %s77, 1
          %s168 = smul.addr %s167, 2
          %s169 = scalar_lea.vmem [#allocation5], %s168
          %s170 = sadd.s32 %s22, %s23
          %s171 = smul.u32 2, %s170
          %s173 = ssub.s32 32, 32
          %174 = vsyncadd %s166, %s173
          %s175 = smul.addr %s21, 2
          %s176 = sadd.s32 %s171, %s175
          %s177 = smul.addr %s176, 16
          %s178 = scalar_lea.hbm %s1, %s177
          %s180 = sshll.u32 %s169, 4
          %s181 = int_to_ptr.vmem [resolvable:$true] %s180
          %183 = dma.hbm_to_vmem [thread:$0]  %s178, 32, %s181, %s166
        $region24: #{tpu_custom_call.1} parent=15 // pred_fallthru
          _
      $region16: #{tpu_custom_call.1} parent=5 // pred_fallthru
        _
      %p184 = scmp.le.s32.totalorder 1, %s14
      %p185 = scmp.lt.s32.totalorder %s14, 3
      %p186 = pnand %p184, %p185
      %p187 = pneg %p186
      // Predicated region
      $region25: #{tpu_custom_call.1} parent=5 // pred_check
        _
      $region26: #{tpu_custom_call.1} parent=5 // pred_check_branch
        %189 = sbr.rel (%p186) target = $region28
      $region27: #{tpu_custom_call.1} parent=5 // pred_region
        %s190 = ssub.s32 %s14, 1
        %s191 = sand.u32 %s50, 1
        %s192 = scalar_lea.sflag [#allocation4], %s191
        %s193 = sand.u32 %s50, 1
        %s194 = smul.addr %s193, 8
        %s195 = scalar_lea.vmem [#allocation3], %s194
        // Predicated region
        $region29: #{tpu_custom_call.1} parent=27 // pred_check
          %p196 = pneg %p63
        $region30: #{tpu_custom_call.1} parent=27 // pred_check_branch
          %198 = sbr.rel (%p196) target = $region32
        $region31: #{tpu_custom_call.1} parent=27 // pred_region
          %199 = dma.done %s192, 128
        $region32: #{tpu_custom_call.1} parent=27 // pred_fallthru
          _
        %s200 = sand.u32 %s80, 1
        %s201 = scalar_lea.sflag [#allocation6], %s200
        %s202 = sand.u32 %s80, 1
        %s203 = smul.addr %s202, 2
        %s204 = scalar_lea.vmem [#allocation5], %s203
        // Predicated region
        $region33: #{tpu_custom_call.1} parent=27 // pred_check
          %p205 = pneg %p93
        $region34: #{tpu_custom_call.1} parent=27 // pred_check_branch
          %207 = sbr.rel (%p205) target = $region36
        $region35: #{tpu_custom_call.1} parent=27 // pred_region
          %208 = dma.done %s201, 32
        $region36: #{tpu_custom_call.1} parent=27 // pred_fallthru
          _
        %s209 = sand.u32 %s50, 1
        %s210 = scalar_lea.sflag [#allocation4], %s209
        %s211 = sand.u32 %s50, 1
        %s212 = smul.addr %s211, 8
        %s213 = scalar_lea.vmem [#allocation3], %s212
        %p214 = pneg %p63
        %p215 = pneg %p60
        %s216 = sand.u32 %s80, 1
        %s217 = scalar_lea.sflag [#allocation6], %s216
        %s218 = sand.u32 %s80, 1
        %s219 = smul.addr %s218, 2
        %s220 = scalar_lea.vmem [#allocation5], %s219
        %p221 = pneg %p93
        %p222 = pneg %p90
        %p223 = pneg %p121
        %p224 = pneg %p118
        %p225 = scmp.lt.s32.totalorder %s24, 1
        %s226 = scalar_select %p225, %s24, 1
        %p227 = scmp.lt.s32.totalorder %s25, 0
        %s228 = scalar_select %p227, %s25, 0
        %s229 = sadd.s32 %s228, %s226
        %s230 = smul.addr %s229, 8
        %s231 = scalar_lea.vmem %s2, %s230
        %s232 = sadd.s32 %s25, %s26
        %s233 = smul.u32 2, %s232
        %s234 = sadd.s32 %s25, %s26
        %s235 = smul.u32 2, %s234
        %p236 = scmp.lt.s32.totalorder %s24, 1
        %s237 = scalar_select %p236, %s24, 1
        %p238 = scmp.lt.s32.totalorder %s25, 0
        %s239 = scalar_select %p238, %s25, 0
        %s240 = sadd.s32 %s239, %s237
        %s241 = smul.addr %s240, 8
        %s242 = scalar_lea.vmem %s2, %s241
        %p243 = scmp.eq.s32.totalorder %s26, 0
        // Predicated region
        $region37: #{tpu_custom_call.1} parent=27 // pred_check
          %p244 = pneg %p243
        $region38: #{tpu_custom_call.1} parent=27 // pred_check_branch
          %246 = sbr.rel (%p244) target = $region40
        $region39: #{tpu_custom_call.1} parent=27 // pred_region
          %vm247 = vcmask 31744
          %248 = vst.msk [vmem:[#allocation2] sm:$0xff] %vm247, 0.0
        $region40: #{tpu_custom_call.1} parent=27 // pred_fallthru
          _
        %v249 = vld [vmem:[%s195] sm:$0xff]
        %v250 = vld [vmem:[%s204] sm:$0x3]
        %v252 = vlaneseq
        %v253 = vshrl.u32 %v252, 7
        %v254 = vsub.s32 0, %v253
        %v255 = vrot.slane %v250, %v254
        %v256 = vlaneseq
        %v257 = vshrl.u32 %v256, 7
        %v258 = vsub.s32 1, %v257
        %v259 = vrot.slane %v250, %v258
        %v260 = vcombine.low %v255, %v259
        %v262 = vmul.f32 %v249, %v260
        %v263 = vmul.f32 %v262, %v260
        %vm266 = vcmask 1040384
        %v267 = vsel %vm266, %v255, 0.0
        %v268 = vsel %vm266, %v259, 0.0
        %v269 = vadd.f32 %v267, %v268
        %270 = vadd.xlane.f32.xlu0 %v269
        %v271 = vpop.xlane.xlu0 %270
        %v272 = vmul.f32 %v250, %v250
        %v274 = vlaneseq
        %v275 = vshrl.u32 %v274, 7
        %v276 = vsub.s32 0, %v275
        %v277 = vrot.slane %v272, %v276
        %v278 = vlaneseq
        %v279 = vshrl.u32 %v278, 7
        %v280 = vsub.s32 1, %v279
        %v281 = vrot.slane %v272, %v280
        %v284 = vsel %vm266, %v277, 0.0
        %v285 = vsel %vm266, %v281, 0.0
        %v286 = vadd.f32 %v284, %v285
        %287 = vadd.xlane.f32.xlu0 %v286
        %v288 = vpop.xlane.xlu0 %287
        %v290 = vcombine.high %v262, %v262
        %vm292 = vcmask 1043456
        %v293 = vsel %vm292, %v262, 0.0
        %v294 = vsel %vm292, %v290, 0.0
        %v295 = vadd.f32 %v293, %v294
        %296 = vadd.xlane.f32.xlu0 %v295
        %v297 = vpop.xlane.xlu0 %296
        %v298 = vmul.f32 %v263, %v260
        %v300 = vcombine.high %v298, %v298
        %v302 = vsel %vm292, %v298, 0.0
        %v303 = vsel %vm292, %v300, 0.0
        %v304 = vadd.f32 %v302, %v303
        %305 = vadd.xlane.f32.xlu0 %v304
        %v306 = vpop.xlane.xlu0 %305
        %v307 = vmul.f32 %v263, %v263
        %v309 = vcombine.high %v307, %v307
        %v311 = vsel %vm292, %v307, 0.0
        %v312 = vsel %vm292, %v309, 0.0
        %v313 = vadd.f32 %v311, %v312
        %314 = vadd.xlane.f32.xlu0 %v313
        %v315 = vpop.xlane.xlu0 %314
        %v316 = vld [vmem:[#allocation2] sm:$0x1]
        %v317 = vadd.f32 %v316, %v271
        %vm318 = vcmask 24576
        %319 = vst.msk [vmem:[#allocation2] sm:$0x1] %vm318, %v317
        %v320 = vld [vmem:[#allocation2 + $0x1] sm:$0x1]
        %v322 = vlaneseq
        %v323 = vand.u32 %v322, 127
        %v324 = vlaneseq
        %v325 = vshrl.u32 %v324, 7
        %v326 = vsub.s32 %v323, %v325
        %v327 = vrot.slane %v297, %v326
        %v329 = vadd.f32 %v320, %v327
        %330 = vst.msk [vmem:[#allocation2 + $0x1] sm:$0x1] %vm318, %v329
        %v331 = vld [vmem:[#allocation2 + $0x2] sm:$0x1]
        %v333 = vlaneseq
        %v334 = vshrl.u32 %v333, 7
        %v335 = vsub.s32 %v323, %v334
        %v336 = vrot.slane %v315, %v335
        %v338 = vadd.f32 %v331, %v336
        %339 = vst.msk [vmem:[#allocation2 + $0x2] sm:$0x1] %vm318, %v338
        %v340 = vld [vmem:[#allocation2 + $0x3] sm:$0x1]
        %v342 = vlaneseq
        %v343 = vshrl.u32 %v342, 7
        %v344 = vsub.s32 %v323, %v343
        %v345 = vrot.slane %v306, %v344
        %v347 = vadd.f32 %v340, %v345
        %348 = vst.msk [vmem:[#allocation2 + $0x3] sm:$0x1] %vm318, %v347
        %v349 = vld [vmem:[#allocation2 + $0x4] sm:$0x1]
        %v350 = vadd.f32 %v349, %v288
        %351 = vst.msk [vmem:[#allocation2 + $0x4] sm:$0x1] %vm318, %v350
        // Predicated region
        $region41: #{tpu_custom_call.1} parent=27 // pred_check
          %p352 = pneg %p243
        $region42: #{tpu_custom_call.1} parent=27 // pred_check_branch
          %354 = sbr.rel (%p352) target = $region44
        $region43: #{tpu_custom_call.1} parent=27 // pred_region
          %v355 = vld [vmem:[#allocation2] sm:$0x1f]
          %vm356 = vcmask 28672
          %357 = vst.msk [vmem:[%s242] sm:$0x1f] %vm356, %v355
        $region44: #{tpu_custom_call.1} parent=27 // pred_fallthru
          _
        %p358 = scmp.lt.s32.totalorder %s24, 1
        %s359 = scalar_select %p358, %s24, 1
        %p360 = scmp.lt.s32.totalorder %s25, 0
        %s361 = scalar_select %p360, %s25, 0
        %s362 = sadd.s32 %s361, %s359
        %s363 = smul.addr %s362, 8
        %s364 = scalar_lea.vmem %s2, %s363
        // Predicated region
        $region45: #{tpu_custom_call.1} parent=27 // pred_check
          %p365 = pneg %p118
        $region46: #{tpu_custom_call.1} parent=27 // pred_check_branch
          %367 = sbr.rel (%p365) target = $region48
        $region47: #{tpu_custom_call.1} parent=27 // pred_region
          _
        $region48: #{tpu_custom_call.1} parent=27 // pred_fallthru
          _
      $region28: #{tpu_custom_call.1} parent=5 // pred_fallthru
        _
      %p368 = scmp.le.s32.totalorder 2, %s14
      // Predicated region
      $region49: #{tpu_custom_call.1} parent=5 // pred_check
        %p369 = pneg %p368
      $region50: #{tpu_custom_call.1} parent=5 // pred_check_branch
        %371 = sbr.rel (%p369) target = $region52
      $region51: #{tpu_custom_call.1} parent=5 // pred_region
        %s372 = ssub.s32 %s14, 2
        // Predicated region
        $region53: #{tpu_custom_call.1} parent=51 // pred_check
          %p373 = pneg %p124
        $region54: #{tpu_custom_call.1} parent=51 // pred_check_branch
          %375 = sbr.rel (%p373) target = $region56
        $region55: #{tpu_custom_call.1} parent=51 // pred_region
          %p376 = scmp.lt.s32.totalorder %s27, 1
          %s377 = scalar_select %p376, %s27, 1
          %p378 = scmp.lt.s32.totalorder %s28, 0
          %s379 = scalar_select %p378, %s28, 0
          %s380 = sadd.s32 %s379, %s377
          %s381 = smul.addr %s380, 8
          %s382 = scalar_lea.vmem %s2, %s381
        $region56: #{tpu_custom_call.1} parent=51 // pred_fallthru
          _
      $region52: #{tpu_custom_call.1} parent=5 // pred_fallthru
        _
    $region6: #{tpu_custom_call.1} parent=1 // loop_footer
      %s18 = sadd.s32 1, %s14
    $region7: #{tpu_custom_call.1} parent=1 // loop_footer_branch
      %13 = sbr.rel target = $region3
    $region8: #{tpu_custom_call.1} parent=1 // loop_exit
      _
    %383 = vsyncpa [#allocation4], 1
    %s384 = scalar_lea.sflag [#allocation4], 1
    %385 = vsyncpa %s384, 1
    %386 = vsyncpa [#allocation6], 1
    %s387 = scalar_lea.sflag [#allocation6], 1
    %388 = vsyncpa %s387, 1

</llo_original>
